<compile_context>
chip_gen: v6e
topology: v6e:2x2x1
jax: 0.10.0
libtpu: 0.0.40
codegen_flags: <defaults>
</compile_context>

<pallas_src>
import functools

import jax
import jax.numpy as jnp
from jax import lax
from jax.experimental import pallas as pl
from jax.experimental.pallas import tpu as pltpu


def _head_kernel(*refs, hs: int, tq: int, train: bool, drop_p: float):
    if train:
        seed_ref, x_ref, w_ref, bias_ref, o_ref = refs
    else:
        x_ref, w_ref, bias_ref, o_ref = refs
        seed_ref = None

    T = x_ref.shape[1]

    # (T, C) bf16 activation tile for this batch element (cast in wrapper).
    x = x_ref[0]

    # Fused QKV projection: one wide MXU pass (N = 3*HS), f32 accumulation.
    # The n_embd**-0.5 scale is already folded into the q columns of w_ref.
    qkv = jnp.dot(x, w_ref[...], preferred_element_type=jnp.float32)  # (T, 3HS)

    q = qkv[:, :hs].astype(jnp.bfloat16)            # (T, HS), scale applied
    k = qkv[:, hs:2 * hs].astype(jnp.bfloat16)      # (T, HS)
    v = qkv[:, 2 * hs:].astype(jnp.bfloat16)        # (T, HS)

    if train and drop_p > 0.0:
        pltpu.prng_seed(seed_ref[0] + pl.program_id(0))
        thresh = jnp.uint32(min(int(drop_p * (2 ** 32)), 2 ** 32 - 1))
        keep_scale = 1.0 / (1.0 - drop_p)

    # Query-row tiling (static loop; n_q_blocks <= 2 at block_size=256).
    # Only key blocks with kj <= qi are computed (causal block-skip).
    n_q_blocks = T // tq
    for qi in range(n_q_blocks):
        q0 = qi * tq
        kq_len = q0 + tq                             # keys beyond are masked

        qb = q[q0:q0 + tq]                           # (tq, HS) bf16
        s = lax.dot_general(
            qb, k[:kq_len], (((1,), (1,)), ((), ())),
            preferred_element_type=jnp.float32)      # (tq, kq_len) f32

        # Additive causal bias (0 on/below diagonal, -1e30 above), resident.
        s = s + bias_ref[pl.ds(q0, tq), pl.ds(0, kq_len)]

        # Numerically-stable softmax in f32; reciprocal on the EUP.
        m = jnp.max(s, axis=-1, keepdims=True)
        p = jnp.exp(s - m)
        denom = jnp.sum(p, axis=-1, keepdims=True)
        p = p * pl.reciprocal(denom, approx=True)    # (tq, kq_len) f32

        if train and drop_p > 0.0:
            # Inverted dropout on the attention weights via the TPU HW PRNG.
            bits = pltpu.bitcast(pltpu.prng_random_bits(p.shape), jnp.uint32)
            p = jnp.where(bits >= thresh, p * keep_scale, 0.0)
            # TODO(synk): random stream differs from torch's RNG (semantics match).

        ob = jnp.dot(p.astype(jnp.bfloat16), v[:kq_len],
                     preferred_element_type=jnp.float32)   # (tq, HS)
        o_ref[0, pl.ds(q0, tq), :] = ob.astype(o_ref.dtype)


def _pick_tq(T):
    for cand in (128, 64, 32, 16, 8):
        if T >= cand and T % cand == 0:
            return cand
    return T


def head_forward(x, wq, wk, wv, *, train=False, drop_p=0.2, seed=0):
    """x: (B, T, C) f32; wq/wk/wv: (C, head_size), pre-transposed (in, out)."""
    B, T, C = x.shape
    hs = wq.shape[-1]
    assert wq.shape == (C, hs) and wk.shape == (C, hs) and wv.shape == (C, hs)
    assert T % 8 == 0 and C % 128 == 0, "sublane/lane alignment of x tile"

    scale = float(C) ** -0.5   # module scales by n_embd**-0.5 (C from x.shape)
    tq = _pick_tq(T)

    # Fused bf16 weight with the scale baked into the q columns.  If this
    # wrapper is called repeatedly, hoist this cast/concat out of the hot path.
    w_qkv = jnp.concatenate([wq * scale, wk, wv], axis=1).astype(jnp.bfloat16)

    # bf16 activations at the DMA boundary (halves HBM->VMEM bytes).
    x_b = x.astype(jnp.bfloat16)

    # Resident additive causal bias.
    bias = jnp.where(jnp.tril(jnp.ones((T, T), dtype=bool)),
                     0.0, -1e30).astype(jnp.float32)

    kernel = functools.partial(_head_kernel, hs=hs, tq=tq,
                               train=train, drop_p=drop_p)

    # `*_` absorbs the scalar-prefetch ref when train=True.
    x_spec = pl.BlockSpec((1, T, C), lambda b, *_: (b, 0, 0))
    w_spec = pl.BlockSpec((C, 3 * hs), lambda b, *_: (0, 0))    # resident
    bias_spec = pl.BlockSpec((T, T), lambda b, *_: (0, 0))      # resident
    o_spec = pl.BlockSpec((1, T, hs), lambda b, *_: (b, 0, 0))

    grid_spec = pltpu.PrefetchScalarGridSpec(
        num_scalar_prefetch=1 if train else 0,   # no SMEM prefetch in eval
        grid=(B,),
        in_specs=[x_spec, w_spec, bias_spec],
        out_specs=o_spec,
    )

    args = (x_b, w_qkv, bias)
    if train:
        args = (jnp.array([seed], dtype=jnp.int32),) + args

    # TODO(synk): for B == 1 on v7x, add a parallel grid axis over query-row
    # blocks to keep both TensorCores busy; at B >= 2 the batch axis covers it.
    out = pl.pallas_call(
        kernel,
        out_shape=jax.ShapeDtypeStruct((B, T, hs), x.dtype),
        grid_spec=grid_spec,
        compiler_params=pltpu.CompilerParams(
            dimension_semantics=("parallel",)),
    )(*args)
    return out


if __name__ == "__main__":
    # nanoGPT-consistent sizes: n_embd=384, head_size=64, block_size=256.
    C, HS = 384, 64
    key = jax.random.PRNGKey(0)
    kq, kk, kv, kx1, kx2 = jax.random.split(key, 5)
    bound = 1.0 / (C ** 0.5)   # nn.Linear init range U(-1/sqrt(fan_in), ...)
    wq = jax.random.uniform(kq, (C, HS), jnp.float32, -bound, bound)
    wk = jax.random.uniform(kk, (C, HS), jnp.float32, -bound, bound)
    wv = jax.random.uniform(kv, (C, HS), jnp.float32, -bound, bound)

    def reference(x):
        q = x @ wq
        k = x @ wk
        v = x @ wv
        T = x.shape[1]
        s = jnp.einsum("btd,bsd->bts", q, k) * (C ** -0.5)
        mask = jnp.tril(jnp.ones((T, T), dtype=bool))
        s = jnp.where(mask, s, -jnp.inf)
        p = jax.nn.softmax(s, axis=-1)
        return jnp.einsum("bts,bsd->btd", p, v)

    # T=64 exercises the single q-block path; T=256 (= block_size) exercises
    # two q-blocks + causal block-skip.
    for T, kx in ((64, kx1), (256, kx2)):
        B = 2
        x = jax.random.normal(kx, (B, T, C), jnp.float32)
        out = jax.block_until_ready(head_forward(x, wq, wk, wv, train=False))
        ref = reference(x)
        assert out.shape == (B, T, HS) and out.dtype == x.dtype
        max_err = float(jnp.max(jnp.abs(out - ref)))
        # bf16 matmuls with f32 accumulation -> loose-ish tolerance vs f32 ref.
        assert jnp.allclose(out, ref, atol=2e-2, rtol=2e-2), (T, max_err)

    print("KERNEL_OK")
</pallas_src>

<mosaic_0001>
module attributes {stable_mosaic.version = 11 : i64} {
  func.func @_head_kernel(%arg0: i32, %arg1: memref<1x64x384xbf16, #tpu.memory_space<vmem>>, %arg2: memref<384x192xbf16, #tpu.memory_space<vmem>>, %arg3: memref<64x64xf32, #tpu.memory_space<vmem>>, %arg4: memref<1x64x64xf32, #tpu.memory_space<vmem>>) attributes {dimension_semantics = [#tpu.dimension_semantics<parallel>], iteration_bounds = array<i64: 2>, scalar_prefetch = 0 : i64, scratch_operands = 0 : i64, tpu.core_type = #tpu.core_type<tc>, window_params = [{transform_indices = @transform_0, window_bounds = array<i64: 1, 64, 384>}, {pipeline_mode = #tpu.pipeline_mode<synchronous>, transform_indices = @transform_1, window_bounds = array<i64: 384, 192>}, {pipeline_mode = #tpu.pipeline_mode<synchronous>, transform_indices = @transform_2, window_bounds = array<i64: 64, 64>}, {transform_indices = @transform_3, window_bounds = array<i64: 1, 64, 64>}]} {
    %c0 = arith.constant 0 : index
    %c0_0 = arith.constant 0 : index
    %c0_1 = arith.constant 0 : index
    %0 = vector.load %arg1[%c0, %c0_0, %c0_1] : memref<1x64x384xbf16, #tpu.memory_space<vmem>>, vector<1x64x384xbf16>
    %1 = vector.shape_cast %0 : vector<1x64x384xbf16> to vector<64x384xbf16>
    %c0_2 = arith.constant 0 : index
    %c0_3 = arith.constant 0 : index
    %2 = vector.load %arg2[%c0_2, %c0_3] : memref<384x192xbf16, #tpu.memory_space<vmem>>, vector<384x192xbf16>
    %cst = arith.constant dense<0.000000e+00> : vector<64x192xf32>
    %3 = tpu.matmul %1, %2, %cst {dimension_numbers = #tpu.dot_dimension_numbers<[1], [0], [0], [1], [0, 0, 1, 1], [], []>} : vector<64x384xbf16>, vector<384x192xbf16>, vector<64x192xf32> -> vector<64x192xf32>
    %4 = vector.extract_strided_slice %3 {offsets = [0, 0], sizes = [64, 64], strides = [1, 1]} : vector<64x192xf32> to vector<64x64xf32>
    %5 = arith.truncf %4 : vector<64x64xf32> to vector<64x64xbf16>
    %6 = vector.extract_strided_slice %3 {offsets = [0, 64], sizes = [64, 64], strides = [1, 1]} : vector<64x192xf32> to vector<64x64xf32>
    %7 = arith.truncf %6 : vector<64x64xf32> to vector<64x64xbf16>
    %8 = vector.extract_strided_slice %3 {offsets = [0, 128], sizes = [64, 64], strides = [1, 1]} : vector<64x192xf32> to vector<64x64xf32>
    %9 = arith.truncf %8 : vector<64x64xf32> to vector<64x64xbf16>
    %cst_4 = arith.constant dense<0.000000e+00> : vector<64x64xf32>
    %10 = tpu.matmul %5, %7, %cst_4 {dimension_numbers = #tpu.dot_dimension_numbers<[1], [1], [0], [0], [0, 0, 1, 0], [], []>} : vector<64x64xbf16>, vector<64x64xbf16>, vector<64x64xf32> -> vector<64x64xf32>
    %c0_5 = arith.constant 0 : index
    %c0_6 = arith.constant 0 : index
    %11 = vector.load %arg3[%c0_5, %c0_6] : memref<64x64xf32, #tpu.memory_space<vmem>>, vector<64x64xf32>
    %12 = arith.addf %10, %11 : vector<64x64xf32>
    %cst_7 = arith.constant dense<0xFF800000> : vector<64xf32>
    %13 = vector.multi_reduction <maximumf>, %12, %cst_7 [1] : vector<64x64xf32> to vector<64xf32>
    %14 = vector.shape_cast %13 : vector<64xf32> to vector<64x1xf32>
    %15 = vector.broadcast %14 : vector<64x1xf32> to vector<64x64xf32>
    %16 = arith.subf %12, %15 : vector<64x64xf32>
    %17 = math.exp %16 : vector<64x64xf32>
    %cst_8 = arith.constant dense<0.000000e+00> : vector<64xf32>
    %18 = vector.multi_reduction <add>, %17, %cst_8 [1] : vector<64x64xf32> to vector<64xf32>
    %19 = vector.shape_cast %18 : vector<64xf32> to vector<64x1xf32>
    %20 = tpu.reciprocal %19 {approx = true} : vector<64x1xf32> -> vector<64x1xf32>
    %21 = vector.broadcast %20 : vector<64x1xf32> to vector<64x64xf32>
    %22 = arith.mulf %17, %21 : vector<64x64xf32>
    %23 = arith.truncf %22 : vector<64x64xf32> to vector<64x64xbf16>
    %cst_9 = arith.constant dense<0.000000e+00> : vector<64x64xf32>
    %24 = tpu.matmul %23, %9, %cst_9 {dimension_numbers = #tpu.dot_dimension_numbers<[1], [0], [0], [1], [0, 0, 1, 1], [], []>} : vector<64x64xbf16>, vector<64x64xbf16>, vector<64x64xf32> -> vector<64x64xf32>
    %c0_10 = arith.constant 0 : index
    %c0_11 = arith.constant 0 : index
    %c0_12 = arith.constant 0 : index
    %25 = vector.load %arg4[%c0_10, %c0_11, %c0_12] : memref<1x64x64xf32, #tpu.memory_space<vmem>>, vector<1x64x64xf32>
    %26 = vector.shape_cast %25 : vector<1x64x64xf32> to vector<64x64xf32>
    %27 = vector.shape_cast %24 : vector<64x64xf32> to vector<1x64x64xf32>
    tpu.vector_store %arg4[%c0_10, %c0_11, %c0_12], %27 {strides = array<i32>} : memref<1x64x64xf32, #tpu.memory_space<vmem>>, vector<1x64x64xf32>,
    return
  }
  func.func @transform_0(%arg0: i32) -> (i32, i32, i32) {
    %c0_i32 = arith.constant 0 : i32
    %c0_i32_0 = arith.constant 0 : i32
    %c0_i32_1 = arith.constant 0 : i32
    return %arg0, %c0_i32, %c0_i32_0 : i32, i32, i32
  }
  func.func @transform_1(%arg0: i32) -> (i32, i32) {
    %c0_i32 = arith.constant 0 : i32
    %c0_i32_0 = arith.constant 0 : i32
    %c0_i32_1 = arith.constant 0 : i32
    return %c0_i32, %c0_i32_0 : i32, i32
  }
  func.func @transform_2(%arg0: i32) -> (i32, i32) {
    %c0_i32 = arith.constant 0 : i32
    %c0_i32_0 = arith.constant 0 : i32
    %c0_i32_1 = arith.constant 0 : i32
    return %c0_i32, %c0_i32_0 : i32, i32
  }
  func.func @transform_3(%arg0: i32) -> (i32, i32, i32) {
    %c0_i32 = arith.constant 0 : i32
    %c0_i32_0 = arith.constant 0 : i32
    %c0_i32_1 = arith.constant 0 : i32
    return %arg0, %c0_i32, %c0_i32_0 : i32, i32, i32
  }
}

</mosaic_0001>

<llo_original>
// kernel: tpu_custom_call.1
$region0: #{tpu_custom_call.1}
  #allocation0 [shape = 'u32[]', space=smem, size = 0x4, offset = 0x4, fixed_abs, tag = 'smem constant byte address 0x4 - core index']
  #allocation1 [shape = 'u32[144,128]{1,0:T(1,128)}', space=vmem, size = 0x12000, scoped, tag = 'internal scratch']
  %s0 = inlined_call_operand.vmem [shape: bf16[2,64,384], index: 0, kind: input, shape index: {}]
  %s1 = inlined_call_operand.vmem [shape: bf16[384,192], index: 1, kind: input, shape index: {}]
  %s2 = inlined_call_operand.vmem [shape: f32[64,64], index: 2, kind: input, shape index: {}]
  %s3 = inlined_call_operand.hbm [shape: f32[2,64,64], index: 3, kind: output, shape index: {}]
  %s4 = sld [smem:[#allocation0]]
  $region45: #{tpu_custom_call.1} parent=0
    _
  %s6 = ssub.s32 1, %s4
  %s7 = scalar_select 0, %s6, %s4
  $region1: #{tpu_custom_call.1} parent=0
    #allocation2 [shape = 'u8[65536]{0}', space=vmem, size = 0x10000, scoped, tag = 'output window, operand 0']
    #allocation3 [shape = 's32[2]{0}', space=sflag, size = 0x8, scoped, tag = 'scoped memory for tpu_custom_call.1']
    %8 = vsyncpa [#allocation3], 0
    %s9 = scalar_lea.sflag [#allocation3], 1
    %10 = vsyncpa %s9, 0
    loop: start=0, step=1, limit=4
    $region2: #{tpu_custom_call.1} parent=1 // loop_pre_header
      _
    $region3: #{tpu_custom_call.1} parent=1 // loop_header
      %s12 = sphi 0, %s16
      %p13 = scmp.ge.s32.totalorder %s12, 4
      %s22 = sphi 0, %s24
      %s25 = sphi 0, %s22
      %s26 = sphi 0, %s25
      %s42 = sphi 0, %s26
      %s46 = sphi 0, %s46
      %s48 = sphi 0, %s46
      %s49 = sphi 0, %s48
      %s63 = sphi 0, %s49
      %s67 = sphi 0, %s67
      %s69 = sphi 0, %s67
      %s70 = sphi 0, %s69
      %s84 = sphi 0, %s70
      %s90 = sphi 0, %s92
      %s93 = sphi 0, %s90
      %s94 = sphi 0, %s93
      %s110 = sphi 0, %s94
    $region4: #{tpu_custom_call.1} parent=1 // loop_header_branch
      %15 = sbr.rel (%p13) target = $region8
    $region5: #{tpu_custom_call.1} parent=1 // loop_body
      %s17 = ssub.s32 %s12, 1
      %s18 = ssub.s32 %s12, 2
      %s19 = sadd.s32 %s12, 1
      %s20 = ssub.s32 %s12, %s19
      %p21 = scmp.eq.s32.totalorder %s20, 0
      %s23 = sadd.s32 %s22, 1
      %s24 = scalar_select %p21, %s22, %s23
      %p27 = pneg %p21
      %p28 = scmp.eq.s32.totalorder %s12, 1
      %p29 = por %p27, %p28
      %p30 = scmp.ne.s32.totalorder %s22, %s25
      %p31 = scmp.eq.s32.totalorder %s12, 0
      %p32 = por %p30, %p31
      %p33 = scmp.ne.s32.totalorder %s22, %s25
      %p34 = scmp.eq.s32.totalorder %s17, 1
      %p35 = por %p33, %p34
      %p36 = scmp.ne.s32.totalorder %s25, %s26
      %p37 = scmp.eq.s32.totalorder %s17, 0
      %p38 = por %p36, %p37
      %p39 = scmp.ne.s32.totalorder %s25, %s26
      %p40 = scmp.eq.s32.totalorder %s18, 1
      %p41 = por %p39, %p40
      %p43 = scmp.ne.s32.totalorder %s26, %s42
      %p44 = scmp.eq.s32.totalorder %s18, 0
      %p45 = por %p43, %p44
      %s47 = sadd.s32 %s46, 1
      %p50 = scmp.eq.s32.totalorder %s12, 1
      %p51 = scmp.ne.s32.totalorder %s46, %s48
      %p52 = scmp.eq.s32.totalorder %s12, 0
      %p53 = por %p51, %p52
      %p54 = scmp.ne.s32.totalorder %s46, %s48
      %p55 = scmp.eq.s32.totalorder %s17, 1
      %p56 = por %p54, %p55
      %p57 = scmp.ne.s32.totalorder %s48, %s49
      %p58 = scmp.eq.s32.totalorder %s17, 0
      %p59 = por %p57, %p58
      %p60 = scmp.ne.s32.totalorder %s48, %s49
      %p61 = scmp.eq.s32.totalorder %s18, 1
      %p62 = por %p60, %p61
      %p64 = scmp.ne.s32.totalorder %s49, %s63
      %p65 = scmp.eq.s32.totalorder %s18, 0
      %p66 = por %p64, %p65
      %s68 = sadd.s32 %s67, 1
      %p71 = scmp.eq.s32.totalorder %s12, 1
      %p72 = scmp.ne.s32.totalorder %s67, %s69
      %p73 = scmp.eq.s32.totalorder %s12, 0
      %p74 = por %p72, %p73
      %p75 = scmp.ne.s32.totalorder %s67, %s69
      %p76 = scmp.eq.s32.totalorder %s17, 1
      %p77 = por %p75, %p76
      %p78 = scmp.ne.s32.totalorder %s69, %s70
      %p79 = scmp.eq.s32.totalorder %s17, 0
      %p80 = por %p78, %p79
      %p81 = scmp.ne.s32.totalorder %s69, %s70
      %p82 = scmp.eq.s32.totalorder %s18, 1
      %p83 = por %p81, %p82
      %p85 = scmp.ne.s32.totalorder %s70, %s84
      %p86 = scmp.eq.s32.totalorder %s18, 0
      %p87 = por %p85, %p86
      %s88 = ssub.s32 %s12, %s19
      %p89 = scmp.eq.s32.totalorder %s88, 0
      %s91 = sadd.s32 %s90, 1
      %s92 = scalar_select %p89, %s90, %s91
      %p95 = pneg %p89
      %p96 = scmp.eq.s32.totalorder %s12, 1
      %p97 = por %p95, %p96
      %p98 = scmp.ne.s32.totalorder %s90, %s93
      %p99 = scmp.eq.s32.totalorder %s12, 0
      %p100 = por %p98, %p99
      %p101 = scmp.ne.s32.totalorder %s90, %s93
      %p102 = scmp.eq.s32.totalorder %s17, 1
      %p103 = por %p101, %p102
      %p104 = scmp.ne.s32.totalorder %s93, %s94
      %p105 = scmp.eq.s32.totalorder %s17, 0
      %p106 = por %p104, %p105
      %p107 = scmp.ne.s32.totalorder %s93, %s94
      %p108 = scmp.eq.s32.totalorder %s18, 1
      %p109 = por %p107, %p108
      %p111 = scmp.ne.s32.totalorder %s94, %s110
      %p112 = scmp.eq.s32.totalorder %s18, 0
      %p113 = por %p111, %p112
      %p114 = scmp.le.s32.totalorder 1, %s12
      %p115 = scmp.lt.s32.totalorder %s12, 3
      %p116 = pnand %p114, %p115
      %p117 = pneg %p116
      // Predicated region
      $region9: #{tpu_custom_call.1} parent=5 // pred_check
        _
      $region10: #{tpu_custom_call.1} parent=5 // pred_check_branch
        %119 = sbr.rel (%p116) target = $region12
      $region11: #{tpu_custom_call.1} parent=5 // pred_region
        %s120 = ssub.s32 %s12, 1
        // Predicated region
        $region13: #{tpu_custom_call.1} parent=11 // pred_check
          %p121 = pneg %p59
        $region14: #{tpu_custom_call.1} parent=11 // pred_check_branch
          %123 = sbr.rel (%p121) target = $region16
        $region15: #{tpu_custom_call.1} parent=11 // pred_region
          _
        $region16: #{tpu_custom_call.1} parent=11 // pred_fallthru
          _
        // Predicated region
        $region17: #{tpu_custom_call.1} parent=11 // pred_check
          %p124 = pneg %p80
        $region18: #{tpu_custom_call.1} parent=11 // pred_check_branch
          %126 = sbr.rel (%p124) target = $region20
        $region19: #{tpu_custom_call.1} parent=11 // pred_region
          _
        $region20: #{tpu_custom_call.1} parent=11 // pred_fallthru
          _
      $region12: #{tpu_custom_call.1} parent=5 // pred_fallthru
        _
      %p127 = scmp.lt.s32.totalorder %s12, 2
      // Predicated region
      $region21: #{tpu_custom_call.1} parent=5 // pred_check
        %p128 = pneg %p127
      $region22: #{tpu_custom_call.1} parent=5 // pred_check_branch
        %130 = sbr.rel (%p128) target = $region24
      $region23: #{tpu_custom_call.1} parent=5 // pred_region
        // Predicated region
        $region25: #{tpu_custom_call.1} parent=23 // pred_check
          %p131 = pneg %p32
        $region26: #{tpu_custom_call.1} parent=23 // pred_check_branch
          %133 = sbr.rel (%p131) target = $region28
        $region27: #{tpu_custom_call.1} parent=23 // pred_region
          %p134 = scmp.lt.s32.totalorder %s12, 1
          %s135 = scalar_select %p134, %s12, 1
          %s136 = smul.addr %s135, 24
          %s137 = smul.addr %s136, 4
          %s138 = scalar_lea.vmem %s0, %s137
        $region28: #{tpu_custom_call.1} parent=23 // pred_fallthru
          _
      $region24: #{tpu_custom_call.1} parent=5 // pred_fallthru
        _
      %p139 = scmp.le.s32.totalorder 1, %s12
      %p140 = scmp.lt.s32.totalorder %s12, 3
      %p141 = pnand %p139, %p140
      %p142 = pneg %p141
      // Predicated region
      $region29: #{tpu_custom_call.1} parent=5 // pred_check
        _
      $region30: #{tpu_custom_call.1} parent=5 // pred_check_branch
        %144 = sbr.rel (%p141) target = $region32
      $region31: #{tpu_custom_call.1} parent=5 // pred_region
        %s145 = ssub.s32 %s12, 1
        %p146 = scmp.lt.s32.totalorder %s17, 1
        %s147 = scalar_select %p146, %s17, 1
        %s148 = smul.addr %s147, 24
        %s149 = smul.addr %s148, 4
        %s150 = scalar_lea.vmem %s0, %s149
        %p151 = pneg %p38
        %p152 = pneg %p35
        %p153 = pneg %p59
        %p154 = pneg %p56
        %p155 = pneg %p80
        %p156 = pneg %p77
        %p157 = pneg %p106
        %p158 = pneg %p103
        %s159 = sand.u32 %s93, 1
        %s160 = scalar_lea.sflag [#allocation3], %s159
        %s161 = sand.u32 %s93, 1
        %s162 = smul.addr %s161, 64
        %s163 = scalar_lea.vmem [#allocation2], %s162
        %p164 = scmp.lt.s32.totalorder %s17, 1
        %s165 = scalar_select %p164, %s17, 1
        %s166 = smul.addr %s165, 24
        %s167 = smul.addr %s166, 4
        %s168 = scalar_lea.vmem %s0, %s167
        %v170 = vld [vmem:[%s168] sm:$0xff]
        %v171 = vld [vmem:[%s168 + $0x8] sm:$0xf]
        %v172 = vld [vmem:[%s168 + $0xc] sm:$0xff]
        %v173 = vld [vmem:[%s168 + $0x14] sm:$0xf]
        %v174 = vld [vmem:[%s168 + $0x18] sm:$0xff]
        %v175 = vld [vmem:[%s168 + $0x20] sm:$0xf]
        %v176 = vld [vmem:[%s168 + $0x24] sm:$0xff]
        %v177 = vld [vmem:[%s168 + $0x2c] sm:$0xf]
        %v178 = vld [vmem:[%s168 + $0x30] sm:$0xff]
        %v179 = vld [vmem:[%s168 + $0x38] sm:$0xf]
        %v180 = vld [vmem:[%s168 + $0x3c] sm:$0xff]
        %v181 = vld [vmem:[%s168 + $0x44] sm:$0xf]
        %v182 = vld [vmem:[%s168 + $0x48] sm:$0xff]
        %v183 = vld [vmem:[%s168 + $0x50] sm:$0xf]
        %v184 = vld [vmem:[%s168 + $0x54] sm:$0xff]
        %v185 = vld [vmem:[%s168 + $0x5c] sm:$0xf]
        %v186 = vld [vmem:[%s1] sm:$0xff]
        %v187 = vld [vmem:[%s1 + $0x8] sm:$0xff]
        %v188 = vld [vmem:[%s1 + $0x10] sm:$0xff]
        %v189 = vld [vmem:[%s1 + $0x18] sm:$0xff]
        %v190 = vld [vmem:[%s1 + $0x20] sm:$0xff]
        %v191 = vld [vmem:[%s1 + $0x28] sm:$0xff]
        %v192 = vld [vmem:[%s1 + $0x30] sm:$0xff]
        %v193 = vld [vmem:[%s1 + $0x38] sm:$0xff]
        %v194 = vld [vmem:[%s1 + $0x40] sm:$0xff]
        %v195 = vld [vmem:[%s1 + $0x48] sm:$0xff]
        %v196 = vld [vmem:[%s1 + $0x50] sm:$0xff]
        %v197 = vld [vmem:[%s1 + $0x58] sm:$0xff]
        %v198 = vld [vmem:[%s1 + $0x60] sm:$0xff]
        %v199 = vld [vmem:[%s1 + $0x68] sm:$0xff]
        %v200 = vld [vmem:[%s1 + $0x70] sm:$0xff]
        %v201 = vld [vmem:[%s1 + $0x78] sm:$0xff]
        %v202 = vld [vmem:[%s1 + $0x80] sm:$0xff]
        %v203 = vld [vmem:[%s1 + $0x88] sm:$0xff]
        %v204 = vld [vmem:[%s1 + $0x90] sm:$0xff]
        %v205 = vld [vmem:[%s1 + $0x98] sm:$0xff]
        %v206 = vld [vmem:[%s1 + $0xa0] sm:$0xff]
        %v207 = vld [vmem:[%s1 + $0xa8] sm:$0xff]
        %v208 = vld [vmem:[%s1 + $0xb0] sm:$0xff]
        %v209 = vld [vmem:[%s1 + $0xb8] sm:$0xff]
        %v210 = vld [vmem:[%s1 + $0xc0] sm:$0xff]
        %v211 = vld [vmem:[%s1 + $0xc8] sm:$0xff]
        %v212 = vld [vmem:[%s1 + $0xd0] sm:$0xff]
        %v213 = vld [vmem:[%s1 + $0xd8] sm:$0xff]
        %v214 = vld [vmem:[%s1 + $0xe0] sm:$0xff]
        %v215 = vld [vmem:[%s1 + $0xe8] sm:$0xff]
        %v216 = vld [vmem:[%s1 + $0xf0] sm:$0xff]
        %v217 = vld [vmem:[%s1 + $0xf8] sm:$0xff]
        %v218 = vld [vmem:[%s1 + $0x100] sm:$0xff]
        %v219 = vld [vmem:[%s1 + $0x108] sm:$0xff]
        %v220 = vld [vmem:[%s1 + $0x110] sm:$0xff]
        %v221 = vld [vmem:[%s1 + $0x118] sm:$0xff]
        %v222 = vld [vmem:[%s1 + $0x120] sm:$0xff]
        %v223 = vld [vmem:[%s1 + $0x128] sm:$0xff]
        %v224 = vld [vmem:[%s1 + $0x130] sm:$0xff]
        %v225 = vld [vmem:[%s1 + $0x138] sm:$0xff]
        %v226 = vld [vmem:[%s1 + $0x140] sm:$0xff]
        %v227 = vld [vmem:[%s1 + $0x148] sm:$0xff]
        %v228 = vld [vmem:[%s1 + $0x150] sm:$0xff]
        %v229 = vld [vmem:[%s1 + $0x158] sm:$0xff]
        %v230 = vld [vmem:[%s1 + $0x160] sm:$0xff]
        %v231 = vld [vmem:[%s1 + $0x168] sm:$0xff]
        %v232 = vld [vmem:[%s1 + $0x170] sm:$0xff]
        %v233 = vld [vmem:[%s1 + $0x178] sm:$0xff]
        %v250 = vunpack.c.l.b16 %v170
        %v251 = vunpack.c.h.b16 %v170
        %v252 = vunpack.c.l.b16 %v171
        %v253 = vunpack.c.l.b16 %v172
        %v254 = vunpack.c.h.b16 %v172
        %v255 = vunpack.c.l.b16 %v173
        %v256 = vunpack.c.l.b16 %v174
        %v257 = vunpack.c.h.b16 %v174
        %v258 = vunpack.c.l.b16 %v175
        %v259 = vunpack.c.l.b16 %v176
        %v260 = vunpack.c.h.b16 %v176
        %v261 = vunpack.c.l.b16 %v177
        %v262 = vunpack.c.l.b16 %v178
        %v263 = vunpack.c.h.b16 %v178
        %v264 = vunpack.c.l.b16 %v179
        %v265 = vunpack.c.l.b16 %v180
        %v266 = vunpack.c.h.b16 %v180
        %v267 = vunpack.c.l.b16 %v181
        %v268 = vunpack.c.l.b16 %v182
        %v269 = vunpack.c.h.b16 %v182
        %v270 = vunpack.c.l.b16 %v183
        %v271 = vunpack.c.l.b16 %v184
        %v272 = vunpack.c.h.b16 %v184
        %v273 = vunpack.c.l.b16 %v185
        %v274 = vpack.c.b16 %v253, %v250
        %v275 = vpack.c.b16 %v254, %v251
        %v276 = vpack.c.b16 %v255, %v252
        %v277 = vpack.c.b16 %v259, %v256
        %v278 = vpack.c.b16 %v260, %v257
        %v279 = vpack.c.b16 %v261, %v258
        %v280 = vpack.c.b16 %v265, %v262
        %v281 = vpack.c.b16 %v266, %v263
        %v282 = vpack.c.b16 %v267, %v264
        %v283 = vpack.c.b16 %v271, %v268
        %v284 = vpack.c.b16 %v272, %v269
        %v285 = vpack.c.b16 %v273, %v270
        %v346 = vunpack.c.l.b16 %v186
        %v347 = vunpack.c.h.b16 %v186
        %v348 = vunpack.c.l.b16 %v187
        %v349 = vunpack.c.h.b16 %v187
        %v350 = vunpack.c.l.b16 %v188
        %v351 = vunpack.c.h.b16 %v188
        %v352 = vunpack.c.l.b16 %v189
        %v353 = vunpack.c.h.b16 %v189
        %v354 = vunpack.c.l.b16 %v190
        %v355 = vunpack.c.h.b16 %v190
        %v356 = vunpack.c.l.b16 %v191
        %v357 = vunpack.c.h.b16 %v191
        %v358 = vunpack.c.l.b16 %v192
        %v359 = vunpack.c.h.b16 %v192
        %v360 = vunpack.c.l.b16 %v193
        %v361 = vunpack.c.h.b16 %v193
        %v362 = vunpack.c.l.b16 %v194
        %v363 = vunpack.c.h.b16 %v194
        %v364 = vunpack.c.l.b16 %v195
        %v365 = vunpack.c.h.b16 %v195
        %v366 = vunpack.c.l.b16 %v196
        %v367 = vunpack.c.h.b16 %v196
        %v368 = vunpack.c.l.b16 %v197
        %v369 = vunpack.c.h.b16 %v197
        %v370 = vunpack.c.l.b16 %v198
        %v371 = vunpack.c.h.b16 %v198
        %v372 = vunpack.c.l.b16 %v199
        %v373 = vunpack.c.h.b16 %v199
        %v374 = vunpack.c.l.b16 %v200
        %v375 = vunpack.c.h.b16 %v200
        %v376 = vunpack.c.l.b16 %v201
        %v377 = vunpack.c.h.b16 %v201
        %v378 = vunpack.c.l.b16 %v202
        %v379 = vunpack.c.h.b16 %v202
        %v380 = vunpack.c.l.b16 %v203
        %v381 = vunpack.c.h.b16 %v203
        %v382 = vunpack.c.l.b16 %v204
        %v383 = vunpack.c.h.b16 %v204
        %v384 = vunpack.c.l.b16 %v205
        %v385 = vunpack.c.h.b16 %v205
        %v386 = vunpack.c.l.b16 %v206
        %v387 = vunpack.c.h.b16 %v206
        %v388 = vunpack.c.l.b16 %v207
        %v389 = vunpack.c.h.b16 %v207
        %v390 = vunpack.c.l.b16 %v208
        %v391 = vunpack.c.h.b16 %v208
        %v392 = vunpack.c.l.b16 %v209
        %v393 = vunpack.c.h.b16 %v209
        %v394 = vunpack.c.l.b16 %v210
        %v395 = vunpack.c.h.b16 %v210
        %v396 = vunpack.c.l.b16 %v211
        %v397 = vunpack.c.h.b16 %v211
        %v398 = vunpack.c.l.b16 %v212
        %v399 = vunpack.c.h.b16 %v212
        %v400 = vunpack.c.l.b16 %v213
        %v401 = vunpack.c.h.b16 %v213
        %v402 = vunpack.c.l.b16 %v214
        %v403 = vunpack.c.h.b16 %v214
        %v404 = vunpack.c.l.b16 %v215
        %v405 = vunpack.c.h.b16 %v215
        %v406 = vunpack.c.l.b16 %v216
        %v407 = vunpack.c.h.b16 %v216
        %v408 = vunpack.c.l.b16 %v217
        %v409 = vunpack.c.h.b16 %v217
        %v410 = vunpack.c.l.b16 %v218
        %v411 = vunpack.c.h.b16 %v218
        %v412 = vunpack.c.l.b16 %v219
        %v413 = vunpack.c.h.b16 %v219
        %v414 = vunpack.c.l.b16 %v220
        %v415 = vunpack.c.h.b16 %v220
        %v416 = vunpack.c.l.b16 %v221
        %v417 = vunpack.c.h.b16 %v221
        %v418 = vunpack.c.l.b16 %v222
        %v419 = vunpack.c.h.b16 %v222
        %v420 = vunpack.c.l.b16 %v223
        %v421 = vunpack.c.h.b16 %v223
        %v422 = vunpack.c.l.b16 %v224
        %v423 = vunpack.c.h.b16 %v224
        %v424 = vunpack.c.l.b16 %v225
        %v425 = vunpack.c.h.b16 %v225
        %v426 = vunpack.c.l.b16 %v226
        %v427 = vunpack.c.h.b16 %v226
        %v428 = vunpack.c.l.b16 %v227
        %v429 = vunpack.c.h.b16 %v227
        %v430 = vunpack.c.l.b16 %v228
        %v431 = vunpack.c.h.b16 %v228
        %v432 = vunpack.c.l.b16 %v229
        %v433 = vunpack.c.h.b16 %v229
        %v434 = vunpack.c.l.b16 %v230
        %v435 = vunpack.c.h.b16 %v230
        %v436 = vunpack.c.l.b16 %v231
        %v437 = vunpack.c.h.b16 %v231
        %v438 = vunpack.c.l.b16 %v232
        %v439 = vunpack.c.h.b16 %v232
        %v440 = vunpack.c.l.b16 %v233
        %v441 = vunpack.c.h.b16 %v233
        %v442 = vpack.c.b16 %v348, %v346
        %v443 = vpack.c.b16 %v349, %v347
        %v444 = vpack.c.b16 %v352, %v350
        %v445 = vpack.c.b16 %v353, %v351
        %v446 = vpack.c.b16 %v356, %v354
        %v447 = vpack.c.b16 %v357, %v355
        %v448 = vpack.c.b16 %v360, %v358
        %v449 = vpack.c.b16 %v361, %v359
        %v450 = vpack.c.b16 %v364, %v362
        %v451 = vpack.c.b16 %v365, %v363
        %v452 = vpack.c.b16 %v368, %v366
        %v453 = vpack.c.b16 %v369, %v367
        %v454 = vpack.c.b16 %v372, %v370
        %v455 = vpack.c.b16 %v373, %v371
        %v456 = vpack.c.b16 %v376, %v374
        %v457 = vpack.c.b16 %v377, %v375
        %v458 = vpack.c.b16 %v380, %v378
        %v459 = vpack.c.b16 %v381, %v379
        %v460 = vpack.c.b16 %v384, %v382
        %v461 = vpack.c.b16 %v385, %v383
        %v462 = vpack.c.b16 %v388, %v386
        %v463 = vpack.c.b16 %v389, %v387
        %v464 = vpack.c.b16 %v392, %v390
        %v465 = vpack.c.b16 %v393, %v391
        %v466 = vpack.c.b16 %v396, %v394
        %v467 = vpack.c.b16 %v397, %v395
        %v468 = vpack.c.b16 %v400, %v398
        %v469 = vpack.c.b16 %v401, %v399
        %v470 = vpack.c.b16 %v404, %v402
        %v471 = vpack.c.b16 %v405, %v403
        %v472 = vpack.c.b16 %v408, %v406
        %v473 = vpack.c.b16 %v409, %v407
        %v474 = vpack.c.b16 %v412, %v410
        %v475 = vpack.c.b16 %v413, %v411
        %v476 = vpack.c.b16 %v416, %v414
        %v477 = vpack.c.b16 %v417, %v415
        %v478 = vpack.c.b16 %v420, %v418
        %v479 = vpack.c.b16 %v421, %v419
        %v480 = vpack.c.b16 %v424, %v422
        %v481 = vpack.c.b16 %v425, %v423
        %v482 = vpack.c.b16 %v428, %v426
        %v483 = vpack.c.b16 %v429, %v427
        %v484 = vpack.c.b16 %v432, %v430
        %v485 = vpack.c.b16 %v433, %v431
        %v486 = vpack.c.b16 %v436, %v434
        %v487 = vpack.c.b16 %v437, %v435
        %v488 = vpack.c.b16 %v440, %v438
        %v489 = vpack.c.b16 %v441, %v439
        %538 = vmatprep.subr.bf16.mxu0 %v457
        %539 = vmatpush1.bf16.msra.mxu0 %v456
        %540 = vmatprep.subr.bf16.mxu0 %v455
        %541 = vmatpush1.bf16.msra.mxu0 %v454
        %542 = vmatprep.subr.bf16.mxu0 %v453
        %543 = vmatpush1.bf16.msra.mxu0 %v452
        %544 = vmatprep.subr.bf16.mxu0 %v451
        %545 = vmatpush1.bf16.msra.mxu0 %v450
        %546 = vmatprep.subr.bf16.mxu0 %v449
        %547 = vmatpush1.bf16.msra.mxu0 %v448
        %548 = vmatprep.subr.bf16.mxu0 %v447
        %549 = vmatpush1.bf16.msra.mxu0 %v446
        %550 = vmatprep.subr.bf16.mxu0 %v445
        %551 = vmatpush1.bf16.msra.mxu0 %v444
        %552 = vmatprep.subr.bf16.mxu0 %v443
        %553 = vmatpush1.bf16.msra.mxu0 %v442
        %554 = vmatprep.subr.bf16.mxu0 %v473
        %555 = vmatpush2.bf16.msra.mxu0 %v472
        %556 = vmatprep.subr.bf16.mxu0 %v471
        %557 = vmatpush2.bf16.msra.mxu0 %v470
        %558 = vmatprep.subr.bf16.mxu0 %v469
        %559 = vmatpush2.bf16.msra.mxu0 %v468
        %560 = vmatprep.subr.bf16.mxu0 %v467
        %561 = vmatpush2.bf16.msra.mxu0 %v466
        %562 = vmatprep.subr.bf16.mxu0 %v465
        %563 = vmatpush2.bf16.msra.mxu0 %v464
        %564 = vmatprep.subr.bf16.mxu0 %v463
        %565 = vmatpush2.bf16.msra.mxu0 %v462
        %566 = vmatprep.subr.bf16.mxu0 %v461
        %567 = vmatpush2.bf16.msra.mxu0 %v460
        %568 = vmatprep.subr.bf16.mxu0 %v459
        %569 = vmatpush2.bf16.msra.mxu0 %v458
        %570 = vmatprep.mubr.bf16.mxu0 %v275
        %571 = vmatmul.mubr.bf16.gmra.mxu0 %v274
        %v572 = vpop.f32.mrf.mxu0
        %v573 = vadd.f32 0.0, %v572
        %v574 = vpop.f32.mrf.mxu0
        %v575 = vadd.f32 0.0, %v574
        %v576 = vpop.f32.mrf.mxu0
        %v577 = vadd.f32 0.0, %v576
        %v578 = vpop.f32.mrf.mxu0
        %v579 = vadd.f32 0.0, %v578
        %580 = vmatprep.mubr.bf16.mxu0 %v278
        %581 = vmatmul.mubr.bf16.gmra.mxu0 %v277
        %v582 = vpop.f32.mrf.mxu0
        %v583 = vadd.f32 0.0, %v582
        %v584 = vpop.f32.mrf.mxu0
        %v585 = vadd.f32 0.0, %v584
        %v586 = vpop.f32.mrf.mxu0
        %v587 = vadd.f32 0.0, %v586
        %v588 = vpop.f32.mrf.mxu0
        %v589 = vadd.f32 0.0, %v588
        %590 = vmatprep.mubr.bf16.mxu0 %v281
        %591 = vmatmul.mubr.bf16.gmra.mxu0 %v280
        %v592 = vpop.f32.mrf.mxu0
        %v593 = vadd.f32 0.0, %v592
        %v594 = vpop.f32.mrf.mxu0
        %v595 = vadd.f32 0.0, %v594
        %v596 = vpop.f32.mrf.mxu0
        %v597 = vadd.f32 0.0, %v596
        %v598 = vpop.f32.mrf.mxu0
        %v599 = vadd.f32 0.0, %v598
        %600 = vmatprep.mubr.bf16.mxu0 %v284
        %601 = vmatmul.mubr.bf16.gmra.mxu0 %v283
        %v602 = vpop.f32.mrf.mxu0
        %v603 = vadd.f32 0.0, %v602
        %v604 = vpop.f32.mrf.mxu0
        %v605 = vadd.f32 0.0, %v604
        %v606 = vpop.f32.mrf.mxu0
        %v607 = vadd.f32 0.0, %v606
        %v608 = vpop.f32.mrf.mxu0
        %v609 = vadd.f32 0.0, %v608
        %610 = vdwg.mxu0
        %611 = vmatprep.subr.bf16.mxu0 %v489
        %612 = vmatpush1.bf16.msra.mxu0 %v488
        %613 = vmatprep.subr.bf16.mxu0 %v487
        %614 = vmatpush1.bf16.msra.mxu0 %v486
        %615 = vmatprep.subr.bf16.mxu0 %v485
        %616 = vmatpush1.bf16.msra.mxu0 %v484
        %617 = vmatprep.subr.bf16.mxu0 %v483
        %618 = vmatpush1.bf16.msra.mxu0 %v482
        %619 = vmatprep.subr.bf16.mxu0 %v481
        %620 = vmatpush1.bf16.msra.mxu0 %v480
        %621 = vmatprep.subr.bf16.mxu0 %v479
        %622 = vmatpush1.bf16.msra.mxu0 %v478
        %623 = vmatprep.subr.bf16.mxu0 %v477
        %624 = vmatpush1.bf16.msra.mxu0 %v476
        %625 = vmatprep.subr.bf16.mxu0 %v475
        %626 = vmatpush1.bf16.msra.mxu0 %v474
        %627 = vmatprep.subr.bf16.mxu0 0
        %628 = vmatpush2.bf16.msra.mxu0 0
        %629 = vmatprep.subr.bf16.mxu0 0
        %630 = vmatpush2.bf16.msra.mxu0 0
        %631 = vmatprep.subr.bf16.mxu0 0
        %632 = vmatpush2.bf16.msra.mxu0 0
        %633 = vmatprep.subr.bf16.mxu0 0
        %634 = vmatpush2.bf16.msra.mxu0 0
        %635 = vmatprep.subr.bf16.mxu0 0
        %636 = vmatpush2.bf16.msra.mxu0 0
        %637 = vmatprep.subr.bf16.mxu0 0
        %638 = vmatpush2.bf16.msra.mxu0 0
        %639 = vmatprep.subr.bf16.mxu0 0
        %640 = vmatpush2.bf16.msra.mxu0 0
        %641 = vmatprep.subr.bf16.mxu0 0
        %642 = vmatpush2.bf16.msra.mxu0 0
        %643 = vmatprep.mubr.bf16.mxu0 0
        %644 = vmatmul.mubr.bf16.gmra.mxu0 %v276
        %v645 = vpop.f32.mrf.mxu0
        %v646 = vadd.f32 %v573, %v645
        %v647 = vpop.f32.mrf.mxu0
        %v648 = vadd.f32 %v575, %v647
        %v649 = vpop.f32.mrf.mxu0
        %v650 = vadd.f32 %v577, %v649
        %v651 = vpop.f32.mrf.mxu0
        %v652 = vadd.f32 %v579, %v651
        %653 = vmatprep.mubr.bf16.mxu0 0
        %654 = vmatmul.mubr.bf16.gmra.mxu0 %v279
        %v655 = vpop.f32.mrf.mxu0
        %v656 = vadd.f32 %v583, %v655
        %v657 = vpop.f32.mrf.mxu0
        %v658 = vadd.f32 %v585, %v657
        %v659 = vpop.f32.mrf.mxu0
        %v660 = vadd.f32 %v587, %v659
        %v661 = vpop.f32.mrf.mxu0
        %v662 = vadd.f32 %v589, %v661
        %663 = vmatprep.mubr.bf16.mxu0 0
        %664 = vmatmul.mubr.bf16.gmra.mxu0 %v282
        %v665 = vpop.f32.mrf.mxu0
        %v666 = vadd.f32 %v593, %v665
        %v667 = vpop.f32.mrf.mxu0
        %v668 = vadd.f32 %v595, %v667
        %v669 = vpop.f32.mrf.mxu0
        %v670 = vadd.f32 %v597, %v669
        %v671 = vpop.f32.mrf.mxu0
        %v672 = vadd.f32 %v599, %v671
        %673 = vmatprep.mubr.bf16.mxu0 0
        %674 = vmatmul.mubr.bf16.gmra.mxu0 %v285
        %v675 = vpop.f32.mrf.mxu0
        %v676 = vadd.f32 %v603, %v675
        %v677 = vpop.f32.mrf.mxu0
        %v678 = vadd.f32 %v605, %v677
        %v679 = vpop.f32.mrf.mxu0
        %v680 = vadd.f32 %v607, %v679
        %v681 = vpop.f32.mrf.mxu0
        %v682 = vadd.f32 %v609, %v681
        %683 = vdwg.mxu0
        %v684 = vpack.c.bf16 %v650, %v646
        %v685 = vpack.c.bf16 %v660, %v656
        %v686 = vpack.c.bf16 %v670, %v666
        %v687 = vpack.c.bf16 %v680, %v676
        %v688 = vpack.c.bf16 %v652, %v648
        %v689 = vpack.c.bf16 %v662, %v658
        %v690 = vpack.c.bf16 %v672, %v668
        %v691 = vpack.c.bf16 %v682, %v678
        %v692 = vld [vmem:[%s2] sm:$0xff]
        %v693 = vld [vmem:[%s2 + $0x8] sm:$0xff]
        %v694 = vld [vmem:[%s2 + $0x10] sm:$0xff]
        %v695 = vld [vmem:[%s2 + $0x18] sm:$0xff]
        %v696 = vld [vmem:[%s2 + $0x20] sm:$0xff]
        %v697 = vld [vmem:[%s2 + $0x28] sm:$0xff]
        %v698 = vld [vmem:[%s2 + $0x30] sm:$0xff]
        %v699 = vld [vmem:[%s2 + $0x38] sm:$0xff]
        %704 = vrot.lane.b32.xlu0 %v684, 64
        %v705 = vpop.permute.xlu0 %704
        %706 = vrot.lane.b32.xlu0 %v685, 64
        %v707 = vpop.permute.xlu0 %706
        %708 = vrot.lane.b32.xlu0 %v686, 64
        %v709 = vpop.permute.xlu0 %708
        %710 = vrot.lane.b32.xlu0 %v687, 64
        %v711 = vpop.permute.xlu0 %710
        %vm712 = vcmask 523264
        %v714 = vsel %vm712, %v684, 0
        %v717 = vsel %vm712, %v685, 0
        %v720 = vsel %vm712, %v686, 0
        %v723 = vsel %vm712, %v687, 0
        %v726 = vsel %vm712, %v705, 0
        %v729 = vsel %vm712, %v707, 0
        %v732 = vsel %vm712, %v709, 0
        %v735 = vsel %vm712, %v711, 0
        %737 = vmatprep.subr.bf16.mxu0 0
        %738 = vmatpush1.bf16.xpose.msra.mxu0 0
        %739 = vmatprep.subr.bf16.mxu0 0
        %740 = vmatpush1.bf16.xpose.msra.mxu0 0
        %741 = vmatprep.subr.bf16.mxu0 0
        %742 = vmatpush1.bf16.xpose.msra.mxu0 0
        %743 = vmatprep.subr.bf16.mxu0 0
        %744 = vmatpush1.bf16.xpose.msra.mxu0 0
        %745 = vmatprep.subr.bf16.mxu0 0
        %746 = vmatpush1.bf16.xpose.msra.mxu0 %v735
        %747 = vmatprep.subr.bf16.mxu0 0
        %748 = vmatpush1.bf16.xpose.msra.mxu0 %v732
        %749 = vmatprep.subr.bf16.mxu0 0
        %750 = vmatpush1.bf16.xpose.msra.mxu0 %v729
        %751 = vmatprep.subr.bf16.mxu0 0
        %752 = vmatpush1.bf16.xpose.msra.mxu0 %v726
        %753 = vmatprep.subr.bf16.mxu0 0
        %754 = vmatpush2.bf16.xpose.msra.mxu0 0
        %755 = vmatprep.subr.bf16.mxu0 0
        %756 = vmatpush2.bf16.xpose.msra.mxu0 0
        %757 = vmatprep.subr.bf16.mxu0 0
        %758 = vmatpush2.bf16.xpose.msra.mxu0 0
        %759 = vmatprep.subr.bf16.mxu0 0
        %760 = vmatpush2.bf16.xpose.msra.mxu0 0
        %761 = vmatprep.subr.bf16.mxu0 0
        %762 = vmatpush2.bf16.xpose.msra.mxu0 0
        %763 = vmatprep.subr.bf16.mxu0 0
        %764 = vmatpush2.bf16.xpose.msra.mxu0 0
        %765 = vmatprep.subr.bf16.mxu0 0
        %766 = vmatpush2.bf16.xpose.msra.mxu0 0
        %767 = vmatprep.subr.bf16.mxu0 0
        %768 = vmatpush2.bf16.xpose.msra.mxu0 0
        %769 = vmatprep.mubr.bf16.mxu0 0
        %770 = vmatmul.mubr.bf16.gmra.mxu0 %v714
        %v771 = vpop.f32.mrf.mxu0
        %v772 = vadd.f32 %v692, %v771
        %v773 = vpop.f32.mrf.mxu0
        %v774 = vpop.f32.mrf.mxu0
        %v775 = vadd.f32 %v693, %v774
        %v776 = vpop.f32.mrf.mxu0
        %777 = vmatprep.mubr.bf16.mxu0 0
        %778 = vmatmul.mubr.bf16.gmra.mxu0 %v717
        %v779 = vpop.f32.mrf.mxu0
        %v780 = vadd.f32 %v694, %v779
        %v781 = vpop.f32.mrf.mxu0
        %v782 = vpop.f32.mrf.mxu0
        %v783 = vadd.f32 %v695, %v782
        %v784 = vpop.f32.mrf.mxu0
        %785 = vmatprep.mubr.bf16.mxu0 0
        %786 = vmatmul.mubr.bf16.gmra.mxu0 %v720
        %v787 = vpop.f32.mrf.mxu0
        %v788 = vadd.f32 %v696, %v787
        %v789 = vpop.f32.mrf.mxu0
        %v790 = vpop.f32.mrf.mxu0
        %v791 = vadd.f32 %v697, %v790
        %v792 = vpop.f32.mrf.mxu0
        %793 = vmatprep.mubr.bf16.mxu0 0
        %794 = vmatmul.mubr.bf16.gmra.mxu0 %v723
        %v795 = vpop.f32.mrf.mxu0
        %v796 = vadd.f32 %v698, %v795
        %v797 = vpop.f32.mrf.mxu0
        %v798 = vpop.f32.mrf.mxu0
        %v799 = vadd.f32 %v699, %v798
        %v800 = vpop.f32.mrf.mxu0
        %801 = vdwg.mxu0
        %v802 = vsel %vm712, %v772, -inf
        %803 = vmax.xlane.f32.xlu0 %v802
        %v804 = vpop.xlane.xlu0 %803
        %v805 = vsel %vm712, %v775, -inf
        %806 = vmax.xlane.f32.xlu0 %v805
        %v807 = vpop.xlane.xlu0 %806
        %v808 = vsel %vm712, %v780, -inf
        %809 = vmax.xlane.f32.xlu0 %v808
        %v810 = vpop.xlane.xlu0 %809
        %v811 = vsel %vm712, %v783, -inf
        %812 = vmax.xlane.f32.xlu0 %v811
        %v813 = vpop.xlane.xlu0 %812
        %v814 = vsel %vm712, %v788, -inf
        %815 = vmax.xlane.f32.xlu0 %v814
        %v816 = vpop.xlane.xlu0 %815
        %v817 = vsel %vm712, %v791, -inf
        %818 = vmax.xlane.f32.xlu0 %v817
        %v819 = vpop.xlane.xlu0 %818
        %v820 = vsel %vm712, %v796, -inf
        %821 = vmax.xlane.f32.xlu0 %v820
        %v822 = vpop.xlane.xlu0 %821
        %v823 = vsel %vm712, %v799, -inf
        %824 = vmax.xlane.f32.xlu0 %v823
        %v825 = vpop.xlane.xlu0 %824
        %v826 = vsub.f32 %v772, %v804
        %v827 = vsub.f32 %v775, %v807
        %v828 = vsub.f32 %v780, %v810
        %v829 = vsub.f32 %v783, %v813
        %v830 = vsub.f32 %v788, %v816
        %v831 = vsub.f32 %v791, %v819
        %v832 = vsub.f32 %v796, %v822
        %v833 = vsub.f32 %v799, %v825
        %v834 = vmul.f32 %v826, 1.442695
        %v835 = vpow.pop %v834
        %v836 = vmul.f32 %v827, 1.442695
        %v837 = vpow.pop %v836
        %v838 = vmul.f32 %v828, 1.442695
        %v839 = vpow.pop %v838
        %v840 = vmul.f32 %v829, 1.442695
        %v841 = vpow.pop %v840
        %v842 = vmul.f32 %v830, 1.442695
        %v843 = vpow.pop %v842
        %v844 = vmul.f32 %v831, 1.442695
        %v845 = vpow.pop %v844
        %v846 = vmul.f32 %v832, 1.442695
        %v847 = vpow.pop %v846
        %v848 = vmul.f32 %v833, 1.442695
        %v849 = vpow.pop %v848
        %v850 = vsel %vm712, %v835, 0.0
        %851 = vadd.xlane.f32.xlu0 %v850
        %v852 = vpop.xlane.xlu0 %851
        %v853 = vsel %vm712, %v837, 0.0
        %854 = vadd.xlane.f32.xlu0 %v853
        %v855 = vpop.xlane.xlu0 %854
        %v856 = vsel %vm712, %v839, 0.0
        %857 = vadd.xlane.f32.xlu0 %v856
        %v858 = vpop.xlane.xlu0 %857
        %v859 = vsel %vm712, %v841, 0.0
        %860 = vadd.xlane.f32.xlu0 %v859
        %v861 = vpop.xlane.xlu0 %860
        %v862 = vsel %vm712, %v843, 0.0
        %863 = vadd.xlane.f32.xlu0 %v862
        %v864 = vpop.xlane.xlu0 %863
        %v865 = vsel %vm712, %v845, 0.0
        %866 = vadd.xlane.f32.xlu0 %v865
        %v867 = vpop.xlane.xlu0 %866
        %v868 = vsel %vm712, %v847, 0.0
        %869 = vadd.xlane.f32.xlu0 %v868
        %v870 = vpop.xlane.xlu0 %869
        %v871 = vsel %vm712, %v849, 0.0
        %872 = vadd.xlane.f32.xlu0 %v871
        %v873 = vpop.xlane.xlu0 %872
        %v874 = vrcp.pop %v852
        %v875 = vrcp.pop %v855
        %v876 = vrcp.pop %v858
        %v877 = vrcp.pop %v861
        %v878 = vrcp.pop %v864
        %v879 = vrcp.pop %v867
        %v880 = vrcp.pop %v870
        %v881 = vrcp.pop %v873
        %v882 = vmul.f32 %v835, %v874
        %v883 = vmul.f32 %v837, %v875
        %v884 = vmul.f32 %v839, %v876
        %v885 = vmul.f32 %v841, %v877
        %v886 = vmul.f32 %v843, %v878
        %v887 = vmul.f32 %v845, %v879
        %v888 = vmul.f32 %v847, %v880
        %v889 = vmul.f32 %v849, %v881
        %v890 = vpack.c.bf16 %v883, %v882
        %v891 = vpack.c.bf16 %v885, %v884
        %v892 = vpack.c.bf16 %v887, %v886
        %v893 = vpack.c.bf16 %v889, %v888
        %v895 = vsel %vm712, %v890, 0
        %v898 = vsel %vm712, %v891, 0
        %v901 = vsel %vm712, %v892, 0
        %v904 = vsel %vm712, %v893, 0
        %906 = vmatprep.subr.bf16.mxu0 0
        %907 = vmatpush1.bf16.msra.mxu0 0
        %908 = vmatprep.subr.bf16.mxu0 0
        %909 = vmatpush1.bf16.msra.mxu0 0
        %910 = vmatprep.subr.bf16.mxu0 0
        %911 = vmatpush1.bf16.msra.mxu0 0
        %912 = vmatprep.subr.bf16.mxu0 0
        %913 = vmatpush1.bf16.msra.mxu0 0
        %914 = vmatprep.subr.bf16.mxu0 0
        %915 = vmatpush1.bf16.msra.mxu0 %v691
        %916 = vmatprep.subr.bf16.mxu0 0
        %917 = vmatpush1.bf16.msra.mxu0 %v690
        %918 = vmatprep.subr.bf16.mxu0 0
        %919 = vmatpush1.bf16.msra.mxu0 %v689
        %920 = vmatprep.subr.bf16.mxu0 0
        %921 = vmatpush1.bf16.msra.mxu0 %v688
        %922 = vmatprep.subr.bf16.mxu0 0
        %923 = vmatpush2.bf16.msra.mxu0 0
        %924 = vmatprep.subr.bf16.mxu0 0
        %925 = vmatpush2.bf16.msra.mxu0 0
        %926 = vmatprep.subr.bf16.mxu0 0
        %927 = vmatpush2.bf16.msra.mxu0 0
        %928 = vmatprep.subr.bf16.mxu0 0
        %929 = vmatpush2.bf16.msra.mxu0 0
        %930 = vmatprep.subr.bf16.mxu0 0
        %931 = vmatpush2.bf16.msra.mxu0 0
        %932 = vmatprep.subr.bf16.mxu0 0
        %933 = vmatpush2.bf16.msra.mxu0 0
        %934 = vmatprep.subr.bf16.mxu0 0
        %935 = vmatpush2.bf16.msra.mxu0 0
        %936 = vmatprep.subr.bf16.mxu0 0
        %937 = vmatpush2.bf16.msra.mxu0 0
        %938 = vmatprep.mubr.bf16.mxu0 0
        %939 = vmatmul.mubr.bf16.gmra.mxu0 %v895
        %v940 = vpop.f32.mrf.mxu0
        %v941 = vadd.f32 0.0, %v940
        %v942 = vpop.f32.mrf.mxu0
        %v943 = vpop.f32.mrf.mxu0
        %v944 = vadd.f32 0.0, %v943
        %v945 = vpop.f32.mrf.mxu0
        %946 = vmatprep.mubr.bf16.mxu0 0
        %947 = vmatmul.mubr.bf16.gmra.mxu0 %v898
        %v948 = vpop.f32.mrf.mxu0
        %v949 = vadd.f32 0.0, %v948
        %v950 = vpop.f32.mrf.mxu0
        %v951 = vpop.f32.mrf.mxu0
        %v952 = vadd.f32 0.0, %v951
        %v953 = vpop.f32.mrf.mxu0
        %954 = vmatprep.mubr.bf16.mxu0 0
        %955 = vmatmul.mubr.bf16.gmra.mxu0 %v901
        %v956 = vpop.f32.mrf.mxu0
        %v957 = vadd.f32 0.0, %v956
        %v958 = vpop.f32.mrf.mxu0
        %v959 = vpop.f32.mrf.mxu0
        %v960 = vadd.f32 0.0, %v959
        %v961 = vpop.f32.mrf.mxu0
        %962 = vmatprep.mubr.bf16.mxu0 0
        %963 = vmatmul.mubr.bf16.gmra.mxu0 %v904
        %v964 = vpop.f32.mrf.mxu0
        %v965 = vadd.f32 0.0, %v964
        %v966 = vpop.f32.mrf.mxu0
        %v967 = vpop.f32.mrf.mxu0
        %v968 = vadd.f32 0.0, %v967
        %v969 = vpop.f32.mrf.mxu0
        %970 = vdwg.mxu0
        %971 = vst.msk [vmem:[%s163] sm:$0xff] %vm712, %v941
        %972 = vst.msk [vmem:[%s163 + $0x8] sm:$0xff] %vm712, %v944
        %973 = vst.msk [vmem:[%s163 + $0x10] sm:$0xff] %vm712, %v949
        %974 = vst.msk [vmem:[%s163 + $0x18] sm:$0xff] %vm712, %v952
        %975 = vst.msk [vmem:[%s163 + $0x20] sm:$0xff] %vm712, %v957
        %976 = vst.msk [vmem:[%s163 + $0x28] sm:$0xff] %vm712, %v960
        %977 = vst.msk [vmem:[%s163 + $0x30] sm:$0xff] %vm712, %v965
        %978 = vst.msk [vmem:[%s163 + $0x38] sm:$0xff] %vm712, %v968
        %s979 = sand.u32 %s93, 1
        %s980 = scalar_lea.sflag [#allocation3], %s979
        %s981 = sand.u32 %s93, 1
        %s982 = smul.addr %s981, 64
        %s983 = scalar_lea.vmem [#allocation2], %s982
        // Predicated region
        $region33: #{tpu_custom_call.1} parent=31 // pred_check
          %p984 = pneg %p103
        $region34: #{tpu_custom_call.1} parent=31 // pred_check_branch
          %986 = sbr.rel (%p984) target = $region36
        $region35: #{tpu_custom_call.1} parent=31 // pred_region
          %s988 = ssub.s32 1024, 1024
          %989 = vsyncadd %s980, %s988
          %s990 = smul.addr %s17, 8
          %s991 = smul.addr %s990, 128
          %s992 = scalar_lea.hbm %s3, %s991
          %s993 = sshll.u32 %s983, 4
          %s994 = int_to_ptr.vmem [resolvable:$true] %s993
          %999 = dma.vmem_to_hbm [thread:$0]  %s994, 1024, %s992, %s980, 128, 128, 8
        $region36: #{tpu_custom_call.1} parent=31 // pred_fallthru
          _
      $region32: #{tpu_custom_call.1} parent=5 // pred_fallthru
        _
      %p1000 = scmp.le.s32.totalorder 2, %s12
      // Predicated region
      $region37: #{tpu_custom_call.1} parent=5 // pred_check
        %p1001 = pneg %p1000
      $region38: #{tpu_custom_call.1} parent=5 // pred_check_branch
        %1003 = sbr.rel (%p1001) target = $region40
      $region39: #{tpu_custom_call.1} parent=5 // pred_region
        %s1004 = ssub.s32 %s12, 2
        // Predicated region
        $region41: #{tpu_custom_call.1} parent=39 // pred_check
          %p1005 = pneg %p109
        $region42: #{tpu_custom_call.1} parent=39 // pred_check_branch
          %1007 = sbr.rel (%p1005) target = $region44
        $region43: #{tpu_custom_call.1} parent=39 // pred_region
          %s1008 = sand.u32 %s94, 1
          %s1009 = scalar_lea.sflag [#allocation3], %s1008
          %s1010 = sand.u32 %s94, 1
          %s1011 = smul.addr %s1010, 64
          %s1012 = scalar_lea.vmem [#allocation2], %s1011
          %1013 = dma.done %s1009, 1024
        $region44: #{tpu_custom_call.1} parent=39 // pred_fallthru
          _
      $region40: #{tpu_custom_call.1} parent=5 // pred_fallthru
        _
    $region6: #{tpu_custom_call.1} parent=1 // loop_footer
      %s16 = sadd.s32 1, %s12
    $region7: #{tpu_custom_call.1} parent=1 // loop_footer_branch
      %11 = sbr.rel target = $region3
    $region8: #{tpu_custom_call.1} parent=1 // loop_exit
      _
    %1014 = vsyncpa [#allocation3], 1
    %s1015 = scalar_lea.sflag [#allocation3], 1
    %1016 = vsyncpa %s1015, 1

</llo_original>
